<compile_context>
chip_gen: v7x
topology: tpu7x:2x2x1
jax: 0.10.0
libtpu: 0.0.40
codegen_flags: <defaults>
</compile_context>

<pallas_src>
import jax
import jax.numpy as jnp
from jax.experimental import pallas as pl
from jax.experimental.pallas import tpu as pltpu


LANES = 128            # vreg lane count (minor dim)
SUBLANES = 8           # f32 sublane count
INT8_ROW_ALIGN = 32    # int8 tiles want second-to-last dim % 32 == 0


def _round_up(x, m):
    return ((x + m - 1) // m) * m


def _vis_loss_kernel(pred_ref, smask_ref, sum_ref, cnt_ref, acc_sum, acc_cnt):
    """pred_ref: (2, T, 128) f32 logits; smask_ref: (T, 128) int8 in {-1,0,+1}.

    CE for 2 classes with target = ~gt collapses to
        loss = softplus((x1 - x0) * (2*gt - 1))
    which needs only 1 exp + 1 log per element.
    """
    step = pl.program_id(1)

    @pl.when(step == 0)
    def _():
        acc_sum[...] = jnp.zeros_like(acc_sum)
        acc_cnt[...] = jnp.zeros_like(acc_cnt)

    x0 = pred_ref[0]                            # (T, 128) logits, class 0
    x1 = pred_ref[1]                            # (T, 128) logits, class 1
    sm = smask_ref[...].astype(jnp.float32)     # {-1, 0, +1}
    m = jnp.abs(sm)                             # plain mask in {0, 1}

    d = (x1 - x0) * sm
    # Numerically stable softplus: max(d,0) + log(1 + exp(-|d|)).
    per = jnp.maximum(d, 0.0) + jnp.log(1.0 + jnp.exp(-jnp.abs(d)))
    per = per * m

    # Fold the (T,128) tile into one (8,128) vreg with pure VPU adds; defer
    # the expensive cross-lane reduction to the (tiny) wrapper epilogue.
    t = per.shape[0]
    acc_sum[...] += jnp.sum(per.reshape(t // SUBLANES, SUBLANES, LANES), axis=0)
    acc_cnt[...] += jnp.sum(m.reshape(t // SUBLANES, SUBLANES, LANES), axis=0)

    @pl.when(step == pl.num_programs(1) - 1)
    def _():
        sum_ref[0] = acc_sum[...]               # lane-dense (8,128) store
        cnt_ref[0] = acc_cnt[...]


def _choose_tiling(n, max_tile_rows, single_block_rows, nsplit):
    """Returns (tile_rows, nsplit, nsteps); padded rows = product of all three."""
    rows_min = _round_up(-(-n // LANES), INT8_ROW_ALIGN)
    if rows_min <= single_block_rows:
        return rows_min, 1, 1                   # small-N: one block, grid (1,1)
    tile_rows = min(max_tile_rows,
                    _round_up(-(-rows_min // nsplit), INT8_ROW_ALIGN))
    nsteps = -(-rows_min // (nsplit * tile_rows))
    return tile_rows, nsplit, nsteps


def neus_vis_loss(pred_vis, gt_vis, network_object_mask, *,
                  max_tile_rows=2048, single_block_rows=512, nsplit=2):
    """pred_vis: (N,2) float, gt_vis: (N,) bool, network_object_mask: (N,) bool.

    Returns a scalar float32 visibility loss (0.0 if the mask is empty).
    """
    pred_vis = jnp.asarray(pred_vis).reshape(-1, 2)
    gt_vis = jnp.asarray(gt_vis).reshape(-1)
    network_object_mask = jnp.asarray(network_object_mask).reshape(-1)
    n = pred_vis.shape[0]

    tile_rows, nsplit_, nsteps = _choose_tiling(
        n, max_tile_rows, single_block_rows, nsplit)
    rows = tile_rows * nsplit_ * nsteps
    n_pad = rows * LANES

    # Logits: cast -> pad -> transpose into one (2, rows, 128) lane-dense slab
    # (single XLA pass; no per-column strided gathers).
    pred_f = pred_vis.astype(jnp.float32)
    if n_pad > n:
        pred_f = jnp.pad(pred_f, ((0, n_pad - n), (0, 0)))
    pred_t = pred_f.T.reshape(2, rows, LANES)

    # Signed int8 mask combining gt_vis and the object mask; padding is 0 and
    # contributes nothing to either sum or count.
    gt_i8 = gt_vis.astype(jnp.int8)
    m_i8 = network_object_mask.astype(jnp.int8)
    smask = (2 * gt_i8 - 1) * m_i8
    if n_pad > n:
        smask = jnp.pad(smask, (0, n_pad - n))
    smask = smask.reshape(rows, LANES)

    pred_spec = pl.BlockSpec((2, tile_rows, LANES),
                             lambda c, i: (0, c * nsteps + i, 0))
    smask_spec = pl.BlockSpec((tile_rows, LANES),
                              lambda c, i: (c * nsteps + i, 0))
    out_spec = pl.BlockSpec((1, SUBLANES, LANES), lambda c, i: (c, 0, 0))

    sums, cnts = pl.pallas_call(
        _vis_loss_kernel,
        out_shape=(
            jax.ShapeDtypeStruct((nsplit_, SUBLANES, LANES), jnp.float32),
            jax.ShapeDtypeStruct((nsplit_, SUBLANES, LANES), jnp.float32),
        ),
        grid_spec=pltpu.PrefetchScalarGridSpec(
            num_scalar_prefetch=0,
            grid=(nsplit_, nsteps),
            in_specs=[pred_spec, smask_spec],
            out_specs=(out_spec, out_spec),
            scratch_shapes=[pltpu.VMEM((SUBLANES, LANES), jnp.float32),
                            pltpu.VMEM((SUBLANES, LANES), jnp.float32)],
        ),
        compiler_params=pltpu.CompilerParams(
            dimension_semantics=("parallel", "arbitrary")),
    )(pred_t, smask)

    # Tiny epilogue: reduce the per-core (8,128) partials and divide once.
    s = jnp.sum(sums)
    c = jnp.sum(cnts)   # f32 count: exact up to 2**24 masked elements
    # TODO(synk): switch the count to an int32 SMEM accumulator if N can exceed ~16M.
    return jnp.where(c > 0.0, s / jnp.maximum(c, 1.0), jnp.float32(0.0))


def _reference(pred_vis, gt_vis, mask):
    """Pure-JAX reference mirroring the PyTorch forward."""
    logits = pred_vis.astype(jnp.float32)
    lse = jax.nn.logsumexp(logits, axis=-1)
    chosen = jnp.where(gt_vis, logits[:, 0], logits[:, 1])   # target = ~gt_vis
    per = lse - chosen
    m = mask.astype(jnp.float32)
    cnt = m.sum()
    return jnp.where(cnt > 0, (per * m).sum() / jnp.maximum(cnt, 1.0), 0.0)


if __name__ == "__main__":
    key = jax.random.PRNGKey(0)
    k1, k2, k3 = jax.random.split(key, 3)

    # Small ray batch; N is deliberately NOT a multiple of 128 (padding path).
    N = 1000
    pred_vis = jax.random.normal(k1, (N, 2), dtype=jnp.float32)
    gt_vis = jax.random.bernoulli(k2, 0.5, (N,))
    mask = jax.random.bernoulli(k3, 0.7, (N,))

    loss = neus_vis_loss(pred_vis, gt_vis, mask)
    jax.block_until_ready(loss)
    ref = _reference(pred_vis, gt_vis, mask)
    assert jnp.allclose(loss, ref, rtol=1e-4, atol=1e-5), (loss, ref)

    # Empty-mask branch (PyTorch returns 0.0).
    loss0 = neus_vis_loss(pred_vis, gt_vis, jnp.zeros((N,), dtype=bool))
    jax.block_until_ready(loss0)
    assert float(loss0) == 0.0

    # Exercise the multi-core split + multi-step accumulation path with tiny tiles.
    N2 = 20000
    p2 = jax.random.normal(k1, (N2, 2), dtype=jnp.float32)
    g2 = jax.random.bernoulli(k2, 0.4, (N2,))
    m2 = jax.random.bernoulli(k3, 0.6, (N2,))
    loss2 = neus_vis_loss(p2, g2, m2, max_tile_rows=32, single_block_rows=0)
    jax.block_until_ready(loss2)
    ref2 = _reference(p2, g2, m2)
    assert jnp.allclose(loss2, ref2, rtol=1e-4, atol=1e-5), (loss2, ref2)

    # Default (large-tile) multi-block configuration.
    N3 = 70000
    p3 = jax.random.normal(k1, (N3, 2), dtype=jnp.float32)
    g3 = jax.random.bernoulli(k2, 0.5, (N3,))
    m3 = jax.random.bernoulli(k3, 0.7, (N3,))
    loss3 = neus_vis_loss(p3, g3, m3)
    jax.block_until_ready(loss3)
    ref3 = _reference(p3, g3, m3)
    assert jnp.allclose(loss3, ref3, rtol=1e-4, atol=1e-5), (loss3, ref3)

    print("KERNEL_OK")
</pallas_src>

<mosaic_0001>
module attributes {stable_mosaic.version = 11 : i64} {
  func.func @_vis_loss_kernel(%arg0: i32, %arg1: i32, %arg2: memref<2x32x128xf32, #tpu.memory_space<vmem>>, %arg3: memref<32x128xi8, #tpu.memory_space<vmem>>, %arg4: memref<1x8x128xf32, #tpu.memory_space<vmem>>, %arg5: memref<1x8x128xf32, #tpu.memory_space<vmem>>, %arg6: memref<8x128xf32, #tpu.memory_space<vmem>>, %arg7: memref<8x128xf32, #tpu.memory_space<vmem>>) attributes {dimension_semantics = [#tpu.dimension_semantics<parallel>, #tpu.dimension_semantics<arbitrary>], iteration_bounds = array<i64: 1, 1>, scalar_prefetch = 0 : i64, scratch_operands = 2 : i64, tpu.core_type = #tpu.core_type<tc>, window_params = [{transform_indices = @transform_0, window_bounds = array<i64: 2, 32, 128>}, {transform_indices = @transform_1, window_bounds = array<i64: 32, 128>}, {transform_indices = @transform_2, window_bounds = array<i64: 1, 8, 128>}, {transform_indices = @transform_3, window_bounds = array<i64: 1, 8, 128>}]} {
    %c0_i32 = arith.constant 0 : i32
    %0 = arith.cmpi eq, %arg1, %c0_i32 : i32
    %1 = arith.extui %0 : i1 to i32
    %c0_i32_0 = arith.constant 0 : i32
    %2 = arith.cmpi ne, %1, %c0_i32_0 : i32
    scf.if %2 {
      %cst_21 = arith.constant 0.000000e+00 : f32
      %36 = vector.broadcast %cst_21 : f32 to vector<8x128xf32>
      %c0_22 = arith.constant 0 : index
      %c0_23 = arith.constant 0 : index
      %37 = vector.load %arg6[%c0_22, %c0_23] : memref<8x128xf32, #tpu.memory_space<vmem>>, vector<8x128xf32>
      tpu.vector_store %arg6[%c0_22, %c0_23], %36 {strides = array<i32>} : memref<8x128xf32, #tpu.memory_space<vmem>>, vector<8x128xf32>,
      %cst_24 = arith.constant 0.000000e+00 : f32
      %38 = vector.broadcast %cst_24 : f32 to vector<8x128xf32>
      %c0_25 = arith.constant 0 : index
      %c0_26 = arith.constant 0 : index
      %39 = vector.load %arg7[%c0_25, %c0_26] : memref<8x128xf32, #tpu.memory_space<vmem>>, vector<8x128xf32>
      tpu.vector_store %arg7[%c0_25, %c0_26], %38 {strides = array<i32>} : memref<8x128xf32, #tpu.memory_space<vmem>>, vector<8x128xf32>,
    } else {
    }
    %c0 = arith.constant 0 : index
    %c0_1 = arith.constant 0 : index
    %c0_2 = arith.constant 0 : index
    %3 = vector.load %arg2[%c0, %c0_1, %c0_2] : memref<2x32x128xf32, #tpu.memory_space<vmem>>, vector<1x32x128xf32>
    %4 = vector.shape_cast %3 : vector<1x32x128xf32> to vector<32x128xf32>
    %c1 = arith.constant 1 : index
    %c0_3 = arith.constant 0 : index
    %c0_4 = arith.constant 0 : index
    %5 = vector.load %arg2[%c1, %c0_3, %c0_4] : memref<2x32x128xf32, #tpu.memory_space<vmem>>, vector<1x32x128xf32>
    %6 = vector.shape_cast %5 : vector<1x32x128xf32> to vector<32x128xf32>
    %c0_5 = arith.constant 0 : index
    %c0_6 = arith.constant 0 : index
    %7 = vector.load %arg3[%c0_5, %c0_6] : memref<32x128xi8, #tpu.memory_space<vmem>>, vector<32x128xi8>
    %8 = arith.sitofp %7 : vector<32x128xi8> to vector<32x128xf32>
    %9 = math.absf %8 : vector<32x128xf32>
    %10 = arith.subf %6, %4 : vector<32x128xf32>
    %11 = arith.mulf %10, %8 : vector<32x128xf32>
    %cst = arith.constant 0.000000e+00 : f32
    %12 = vector.broadcast %cst : f32 to vector<32x128xf32>
    %13 = arith.maximumf %11, %12 : vector<32x128xf32>
    %14 = math.absf %11 : vector<32x128xf32>
    %cst_7 = arith.constant 0.000000e+00 : f32
    %15 = vector.broadcast %cst_7 : f32 to vector<32x128xf32>
    %16 = arith.subf %15, %14 : vector<32x128xf32>
    %17 = math.exp %16 : vector<32x128xf32>
    %cst_8 = arith.constant 1.000000e+00 : f32
    %18 = vector.broadcast %cst_8 : f32 to vector<32x128xf32>
    %19 = arith.addf %18, %17 : vector<32x128xf32>
    %20 = math.log %19 : vector<32x128xf32>
    %21 = arith.addf %13, %20 : vector<32x128xf32>
    %22 = arith.mulf %21, %9 : vector<32x128xf32>
    %c0_9 = arith.constant 0 : index
    %c0_10 = arith.constant 0 : index
    %23 = vector.load %arg6[%c0_9, %c0_10] : memref<8x128xf32, #tpu.memory_space<vmem>>, vector<8x128xf32>
    %24 = vector.shape_cast %22 : vector<32x128xf32> to vector<4x8x128xf32>
    %cst_11 = arith.constant dense<0.000000e+00> : vector<8x128xf32>
    %25 = vector.multi_reduction <add>, %24, %cst_11 [0] : vector<4x8x128xf32> to vector<8x128xf32>
    %26 = arith.addf %23, %25 : vector<8x128xf32>
    %c0_12 = arith.constant 0 : index
    %c0_13 = arith.constant 0 : index
    %27 = vector.load %arg6[%c0_12, %c0_13] : memref<8x128xf32, #tpu.memory_space<vmem>>, vector<8x128xf32>
    tpu.vector_store %arg6[%c0_12, %c0_13], %26 {strides = array<i32>} : memref<8x128xf32, #tpu.memory_space<vmem>>, vector<8x128xf32>,
    %c0_14 = arith.constant 0 : index
    %c0_15 = arith.constant 0 : index
    %28 = vector.load %arg7[%c0_14, %c0_15] : memref<8x128xf32, #tpu.memory_space<vmem>>, vector<8x128xf32>
    %29 = vector.shape_cast %9 : vector<32x128xf32> to vector<4x8x128xf32>
    %cst_16 = arith.constant dense<0.000000e+00> : vector<8x128xf32>
    %30 = vector.multi_reduction <add>, %29, %cst_16 [0] : vector<4x8x128xf32> to vector<8x128xf32>
    %31 = arith.addf %28, %30 : vector<8x128xf32>
    %c0_17 = arith.constant 0 : index
    %c0_18 = arith.constant 0 : index
    %32 = vector.load %arg7[%c0_17, %c0_18] : memref<8x128xf32, #tpu.memory_space<vmem>>, vector<8x128xf32>
    tpu.vector_store %arg7[%c0_17, %c0_18], %31 {strides = array<i32>} : memref<8x128xf32, #tpu.memory_space<vmem>>, vector<8x128xf32>,
    %c0_i32_19 = arith.constant 0 : i32
    %33 = arith.cmpi eq, %arg1, %c0_i32_19 : i32
    %34 = arith.extui %33 : i1 to i32
    %c0_i32_20 = arith.constant 0 : i32
    %35 = arith.cmpi ne, %34, %c0_i32_20 : i32
    scf.if %35 {
      %c0_21 = arith.constant 0 : index
      %c0_22 = arith.constant 0 : index
      %36 = vector.load %arg6[%c0_21, %c0_22] : memref<8x128xf32, #tpu.memory_space<vmem>>, vector<8x128xf32>
      %c0_23 = arith.constant 0 : index
      %c0_24 = arith.constant 0 : index
      %c0_25 = arith.constant 0 : index
      %37 = vector.load %arg4[%c0_23, %c0_24, %c0_25] : memref<1x8x128xf32, #tpu.memory_space<vmem>>, vector<1x8x128xf32>
      %38 = vector.shape_cast %37 : vector<1x8x128xf32> to vector<8x128xf32>
      %39 = vector.shape_cast %36 : vector<8x128xf32> to vector<1x8x128xf32>
      tpu.vector_store %arg4[%c0_23, %c0_24, %c0_25], %39 {strides = array<i32>} : memref<1x8x128xf32, #tpu.memory_space<vmem>>, vector<1x8x128xf32>,
      %c0_26 = arith.constant 0 : index
      %c0_27 = arith.constant 0 : index
      %40 = vector.load %arg7[%c0_26, %c0_27] : memref<8x128xf32, #tpu.memory_space<vmem>>, vector<8x128xf32>
      %c0_28 = arith.constant 0 : index
      %c0_29 = arith.constant 0 : index
      %c0_30 = arith.constant 0 : index
      %41 = vector.load %arg5[%c0_28, %c0_29, %c0_30] : memref<1x8x128xf32, #tpu.memory_space<vmem>>, vector<1x8x128xf32>
      %42 = vector.shape_cast %41 : vector<1x8x128xf32> to vector<8x128xf32>
      %43 = vector.shape_cast %40 : vector<8x128xf32> to vector<1x8x128xf32>
      tpu.vector_store %arg5[%c0_28, %c0_29, %c0_30], %43 {strides = array<i32>} : memref<1x8x128xf32, #tpu.memory_space<vmem>>, vector<1x8x128xf32>,
    } else {
    }
    return
  }
  func.func @transform_0(%arg0: i32, %arg1: i32) -> (i32, i32, i32) {
    %c1_i32 = arith.constant 1 : i32
    %0 = arith.muli %arg0, %c1_i32 : i32
    %1 = arith.addi %0, %arg1 : i32
    %c0_i32 = arith.constant 0 : i32
    %c0_i32_0 = arith.constant 0 : i32
    %c0_i32_1 = arith.constant 0 : i32
    return %c0_i32, %1, %c0_i32_0 : i32, i32, i32
  }
  func.func @transform_1(%arg0: i32, %arg1: i32) -> (i32, i32) {
    %c1_i32 = arith.constant 1 : i32
    %0 = arith.muli %arg0, %c1_i32 : i32
    %1 = arith.addi %0, %arg1 : i32
    %c0_i32 = arith.constant 0 : i32
    %c0_i32_0 = arith.constant 0 : i32
    return %1, %c0_i32 : i32, i32
  }
  func.func @transform_2(%arg0: i32, %arg1: i32) -> (i32, i32, i32) {
    %c0_i32 = arith.constant 0 : i32
    %c0_i32_0 = arith.constant 0 : i32
    %c0_i32_1 = arith.constant 0 : i32
    return %arg0, %c0_i32, %c0_i32_0 : i32, i32, i32
  }
  func.func @transform_3(%arg0: i32, %arg1: i32) -> (i32, i32, i32) {
    %c0_i32 = arith.constant 0 : i32
    %c0_i32_0 = arith.constant 0 : i32
    %c0_i32_1 = arith.constant 0 : i32
    return %arg0, %c0_i32, %c0_i32_0 : i32, i32, i32
  }
}

</mosaic_0001>

<llo_original>
// kernel: tpu_custom_call.1
$region0: #{tpu_custom_call.1}
  #allocation0 [shape = 'u32[]', space=smem, size = 0x4, offset = 0x4, fixed_abs, tag = 'smem constant byte address 0x4 - core index']
  #allocation1 [shape = 'u32[144,128]{1,0:T(1,128)}', space=vmem, size = 0x12000, scoped, tag = 'internal scratch']
  #allocation2 [shape = 'f32[8,128]{1,0:T(8,128)}', space=vmem, size = 0x1000, scoped, tag = 'scratch operand']
  #allocation3 [shape = 'f32[8,128]{1,0:T(8,128)}', space=vmem, size = 0x1000, scoped, tag = 'scratch operand']
  %s0 = inlined_call_operand.hbm [shape: f32[2,32,128], index: 0, kind: input, shape index: {}]
  %s1 = inlined_call_operand.hbm [shape: s8[32,128], index: 1, kind: input, shape index: {}]
  %s2 = inlined_call_operand.hbm [shape: f32[1,8,128], index: 2, kind: output, shape index: {0}]
  %s3 = inlined_call_operand.hbm [shape: f32[1,8,128], index: 3, kind: output, shape index: {1}]
  %4 = xla_tuple %s2, %s3
  %s5 = sld [smem:[#allocation0]]
  $region42: #{tpu_custom_call.1} parent=0
    _
  %s7 = ssub.s32 1, %s5
  %s8 = scalar_select 0, %s7, %s5
  $region1: #{tpu_custom_call.1} parent=0
    #allocation4 [shape = 'u8[32768]{0}', space=vmem, size = 0x8000, scoped, tag = 'input window, operand 0, single buffered']
    #allocation5 [shape = 's32[1]{0}', space=sflag, size = 0x4, scoped, tag = 'scoped memory for tpu_custom_call.1']
    #allocation6 [shape = 's32[1]{0}', space=sflag, size = 0x4, scoped, tag = 'scoped memory for tpu_custom_call.1']
    #allocation7 [shape = 'u8[4096]{0}', space=vmem, size = 0x1000, scoped, tag = 'input window, operand 1, single buffered']
    #allocation8 [shape = 's32[1]{0}', space=sflag, size = 0x4, scoped, tag = 'scoped memory for tpu_custom_call.1']
    #allocation9 [shape = 'u8[4096]{0}', space=vmem, size = 0x1000, scoped, tag = 'output window, operand 0, single buffered']
    #allocation10 [shape = 'u8[4096]{0}', space=vmem, size = 0x1000, scoped, tag = 'output window, operand 1, single buffered']
    #allocation11 [shape = 's32[1]{0}', space=sflag, size = 0x4, scoped, tag = 'scoped memory for tpu_custom_call.1']
    %9 = vsyncpa [#allocation5], 0
    %10 = vsyncpa [#allocation8], 0
    %11 = vsyncpa [#allocation6], 0
    %12 = vsyncpa [#allocation11], 0
    // Predicated region
    $region2: #{tpu_custom_call.1} parent=1 // pred_check
      _
    $region3: #{tpu_custom_call.1} parent=1 // pred_check_branch
      %14 = sbr.rel (0) target = $region5
    $region4: #{tpu_custom_call.1} parent=1 // pred_region
      %s15 = sadd.s32 0, 0
      %s16 = smul.u32 4, %s15
      %s18 = ssub.s32 1024, 1024
      %19 = vsyncadd [#allocation5], %s18
      %s20 = smul.addr %s16, 128
      %s21 = scalar_lea.hbm %s0, %s20
      %s22 = sshll.u32 [#allocation4], 4
      %s23 = int_to_ptr.vmem [resolvable:$true] %s22
      %28 = dma.hbm_to_vmem [thread:$0]  %s21, 1024, %s23, [#allocation5], 128, 128, 8
    $region5: #{tpu_custom_call.1} parent=1 // pred_fallthru
      _
    // Predicated region
    $region6: #{tpu_custom_call.1} parent=1 // pred_check
      _
    $region7: #{tpu_custom_call.1} parent=1 // pred_check_branch
      %30 = sbr.rel (0) target = $region9
    $region8: #{tpu_custom_call.1} parent=1 // pred_region
      %s31 = sadd.s32 0, 0
      %s33 = ssub.s32 128, 128
      %34 = vsyncadd [#allocation8], %s33
      %s35 = smul.addr %s31, 128
      %s36 = scalar_lea.hbm %s1, %s35
      %s38 = sshll.u32 [#allocation7], 4
      %s39 = int_to_ptr.vmem [resolvable:$true] %s38
      %41 = dma.hbm_to_vmem [thread:$0]  %s36, 128, %s39, [#allocation8]
    $region9: #{tpu_custom_call.1} parent=1 // pred_fallthru
      _
    // Predicated region
    $region10: #{tpu_custom_call.1} parent=1 // pred_check
      _
    $region11: #{tpu_custom_call.1} parent=1 // pred_check_branch
      %43 = sbr.rel (0) target = $region13
    $region12: #{tpu_custom_call.1} parent=1 // pred_region
      %44 = dma.done [#allocation5], 1024
    $region13: #{tpu_custom_call.1} parent=1 // pred_fallthru
      _
    // Predicated region
    $region14: #{tpu_custom_call.1} parent=1 // pred_check
      _
    $region15: #{tpu_custom_call.1} parent=1 // pred_check_branch
      %46 = sbr.rel (0) target = $region17
    $region16: #{tpu_custom_call.1} parent=1 // pred_region
      %47 = dma.done [#allocation8], 128
    $region17: #{tpu_custom_call.1} parent=1 // pred_fallthru
      _
    %s48 = sadd.s32 0, 0
    %s49 = smul.u32 4, %s48
    %s50 = sadd.s32 0, 0
    %p51 = scmp.eq.s32.totalorder 0, 0
    // Predicated region
    $region18: #{tpu_custom_call.1} parent=1 // pred_check
      %p52 = pneg %p51
    $region19: #{tpu_custom_call.1} parent=1 // pred_check_branch
      %54 = sbr.rel (%p52) target = $region21
    $region20: #{tpu_custom_call.1} parent=1 // pred_region
      %55 = vst [vmem:[#allocation2] sm:$0xff] 0.0
      %56 = vst [vmem:[#allocation3] sm:$0xff] 0.0
    $region21: #{tpu_custom_call.1} parent=1 // pred_fallthru
      _
    %v57 = vld [vmem:[#allocation4] sm:$0xff]
    %v58 = vld [vmem:[#allocation4 + $0x8] sm:$0xff]
    %v59 = vld [vmem:[#allocation4 + $0x10] sm:$0xff]
    %v60 = vld [vmem:[#allocation4 + $0x18] sm:$0xff]
    %s61 = scalar_lea.vmem [#allocation4], 32
    %v62 = vld [vmem:[%s61] sm:$0xff]
    %v63 = vld [vmem:[%s61 + $0x8] sm:$0xff]
    %v64 = vld [vmem:[%s61 + $0x10] sm:$0xff]
    %v65 = vld [vmem:[%s61 + $0x18] sm:$0xff]
    %v66 = vld [vmem:[#allocation7] sm:$0xff]
    %v67 = vunpack.c.0.s8 %v66
    %v68 = vunpack.c.1.s8 %v66
    %v69 = vunpack.c.2.s8 %v66
    %v70 = vunpack.c.3.s8 %v66
    %v71 = vcvt.s32.f32 %v67
    %v72 = vcvt.s32.f32 %v68
    %v73 = vcvt.s32.f32 %v69
    %v74 = vcvt.s32.f32 %v70
    %v75 = vand.u32 2147483647, %v71
    %v76 = vand.u32 2147483647, %v72
    %v77 = vand.u32 2147483647, %v73
    %v78 = vand.u32 2147483647, %v74
    %v79 = vsub.f32 %v62, %v57
    %v80 = vsub.f32 %v63, %v58
    %v81 = vsub.f32 %v64, %v59
    %v82 = vsub.f32 %v65, %v60
    %v83 = vmul.f32 %v79, %v71
    %v84 = vmul.f32 %v80, %v72
    %v85 = vmul.f32 %v81, %v73
    %v86 = vmul.f32 %v82, %v74
    %v87 = vmax.f32 %v83, 0.0
    %v88 = vmax.f32 %v84, 0.0
    %v89 = vmax.f32 %v85, 0.0
    %v90 = vmax.f32 %v86, 0.0
    %v91 = vand.u32 2147483647, %v83
    %v92 = vand.u32 2147483647, %v84
    %v93 = vand.u32 2147483647, %v85
    %v94 = vand.u32 2147483647, %v86
    %v95 = vsub.f32 0.0, %v91
    %v96 = vsub.f32 0.0, %v92
    %v97 = vsub.f32 0.0, %v93
    %v98 = vsub.f32 0.0, %v94
    %v99 = vmul.f32 %v95, 1.442695
    %v100 = vpow.pop %v99
    %v101 = vmul.f32 %v96, 1.442695
    %v102 = vpow.pop %v101
    %v103 = vmul.f32 %v97, 1.442695
    %v104 = vpow.pop %v103
    %v105 = vmul.f32 %v98, 1.442695
    %v106 = vpow.pop %v105
    %v107 = vadd.f32 %v100, 1.0
    %v108 = vadd.f32 %v102, 1.0
    %v109 = vadd.f32 %v104, 1.0
    %v110 = vadd.f32 %v106, 1.0
    %v111 = vlog2.pop %v107
    %v112 = vmul.f32 %v111, 0.6931472
    %v113 = vlog2.pop %v108
    %v114 = vmul.f32 %v113, 0.6931472
    %v115 = vlog2.pop %v109
    %v116 = vmul.f32 %v115, 0.6931472
    %v117 = vlog2.pop %v110
    %v118 = vmul.f32 %v117, 0.6931472
    %v119 = vadd.f32 %v87, %v112
    %v120 = vadd.f32 %v88, %v114
    %v121 = vadd.f32 %v89, %v116
    %v122 = vadd.f32 %v90, %v118
    %v123 = vmul.f32 %v119, %v75
    %v124 = vmul.f32 %v120, %v76
    %v125 = vmul.f32 %v121, %v77
    %v126 = vmul.f32 %v122, %v78
    %v127 = vld [vmem:[#allocation2] sm:$0xff]
    %v128 = vadd.f32 %v123, %v124
    %v129 = vadd.f32 %v128, %v125
    %v130 = vadd.f32 %v129, %v126
    %v131 = vadd.f32 %v127, %v130
    %132 = vst [vmem:[#allocation2] sm:$0xff] %v131
    %v133 = vld [vmem:[#allocation3] sm:$0xff]
    %v134 = vadd.f32 %v75, %v76
    %v135 = vadd.f32 %v134, %v77
    %v136 = vadd.f32 %v135, %v78
    %v137 = vadd.f32 %v133, %v136
    %138 = vst [vmem:[#allocation3] sm:$0xff] %v137
    // Predicated region
    $region22: #{tpu_custom_call.1} parent=1 // pred_check
      %p139 = pneg %p51
    $region23: #{tpu_custom_call.1} parent=1 // pred_check_branch
      %141 = sbr.rel (%p139) target = $region25
    $region24: #{tpu_custom_call.1} parent=1 // pred_region
      %v142 = vld [vmem:[#allocation2] sm:$0xff]
      %143 = vst [vmem:[#allocation9] sm:$0xff] %v142
      %v144 = vld [vmem:[#allocation3] sm:$0xff]
      %145 = vst [vmem:[#allocation10] sm:$0xff] %v144
    $region25: #{tpu_custom_call.1} parent=1 // pred_fallthru
      _
    // Predicated region
    $region26: #{tpu_custom_call.1} parent=1 // pred_check
      _
    $region27: #{tpu_custom_call.1} parent=1 // pred_check_branch
      %147 = sbr.rel (0) target = $region29
    $region28: #{tpu_custom_call.1} parent=1 // pred_region
      %s149 = ssub.s32 128, 128
      %150 = vsyncadd [#allocation6], %s149
      %s152 = sshll.u32 [#allocation9], 4
      %s153 = int_to_ptr.vmem [resolvable:$true] %s152
      %155 = dma.vmem_to_hbm [thread:$0]  %s153, 128, %s2, [#allocation6]
    $region29: #{tpu_custom_call.1} parent=1 // pred_fallthru
      _
    // Predicated region
    $region30: #{tpu_custom_call.1} parent=1 // pred_check
      _
    $region31: #{tpu_custom_call.1} parent=1 // pred_check_branch
      %157 = sbr.rel (0) target = $region33
    $region32: #{tpu_custom_call.1} parent=1 // pred_region
      %s159 = ssub.s32 128, 128
      %160 = vsyncadd [#allocation11], %s159
      %s162 = sshll.u32 [#allocation10], 4
      %s163 = int_to_ptr.vmem [resolvable:$true] %s162
      %165 = dma.vmem_to_hbm [thread:$0]  %s163, 128, %s3, [#allocation11]
    $region33: #{tpu_custom_call.1} parent=1 // pred_fallthru
      _
    // Predicated region
    $region34: #{tpu_custom_call.1} parent=1 // pred_check
      _
    $region35: #{tpu_custom_call.1} parent=1 // pred_check_branch
      %167 = sbr.rel (0) target = $region37
    $region36: #{tpu_custom_call.1} parent=1 // pred_region
      %168 = dma.done [#allocation6], 128
    $region37: #{tpu_custom_call.1} parent=1 // pred_fallthru
      _
    // Predicated region
    $region38: #{tpu_custom_call.1} parent=1 // pred_check
      _
    $region39: #{tpu_custom_call.1} parent=1 // pred_check_branch
      %170 = sbr.rel (0) target = $region41
    $region40: #{tpu_custom_call.1} parent=1 // pred_region
      %171 = dma.done [#allocation11], 128
    $region41: #{tpu_custom_call.1} parent=1 // pred_fallthru
      _
    %172 = vsyncpa [#allocation5], 1
    %173 = vsyncpa [#allocation8], 1
    %174 = vsyncpa [#allocation6], 1
    %175 = vsyncpa [#allocation11], 1

</llo_original>
